<compile_context>
chip_gen: v6e
topology: v6e:2x2x1
jax: 0.10.0
libtpu: 0.0.40
codegen_flags: <defaults>
</compile_context>

<pallas_src>
import functools

import jax
import jax.numpy as jnp
from jax.experimental import pallas as pl
from jax.experimental.pallas import tpu as pltpu

_LANE = 128   # padded lane width for hidden (64, 32) and class dims
_TB_MAX = 1024  # default batch tile: ~1.6 MB bf16 x-tile/buffer, safe for v7x 64 MiB VMEM


def _round_up(n, m):
    return ((n + m - 1) // m) * m


def _mlp_fwd_kernel(x_ref, w1_ref, b1_ref, w2_ref, b2_ref, w3_ref, b3_ref,
                    slab_ref, mpart_ref, spart_ref,
                    *, batch, n_classes, tile_b):
    """One batch tile of the fused MLP.

    slab columns:  [0:128) features (real width 32, zero padded)
                   [128:256) logits (real width n_classes, zero padded)
                   [256:384) lane 0 = argmax(logits) as f32, rest zero
    mpart/spart:   per-tile column max / sum-of-exp partials for the dim=0 softmax.
    """
    x = x_ref[...]                                              # (TB, 784) bf16

    # layer1: Linear(784 -> 64) + ReLU  (weights pre-padded to 128 lanes, pad = 0)
    h1 = jnp.dot(x, w1_ref[...], preferred_element_type=jnp.float32)
    h1 = jnp.maximum(h1 + b1_ref[...], 0.0)                     # (TB, 128) f32

    # layer2: Linear(64 -> 32) + ReLU -> features (padded lanes stay exactly 0)
    h2 = jnp.dot(h1, w2_ref[...], preferred_element_type=jnp.float32)
    h2 = jnp.maximum(h2 + b2_ref[...], 0.0)                     # (TB, 128) f32

    # classifier: Linear(32 -> n_classes) -> logits (padded lanes exactly 0)
    logits = jnp.dot(h2, w3_ref[...], preferred_element_type=jnp.float32)
    logits = logits + b3_ref[...]                               # (TB, 128) f32

    col = jax.lax.broadcasted_iota(jnp.int32, logits.shape, 1)
    neg_inf = jnp.float32(-jnp.inf)

    # Y_hat = topk(logits, 1, dim=1)[1] == first argmax over the real class columns
    class_logits = jnp.where(col < n_classes, logits, neg_inf)
    row_max = jnp.max(class_logits, axis=1, keepdims=True)      # (TB, 1) f32
    yhat = jnp.min(jnp.where(class_logits == row_max, col, _LANE),
                   axis=1, keepdims=True)                       # (TB, 1) int32
    yhat_lane = jnp.where(col == 0, yhat.astype(jnp.float32), 0.0)

    # lane-aligned full-width stores into the packed output slab
    slab_ref[:, 0 * _LANE:1 * _LANE] = h2
    slab_ref[:, 1 * _LANE:2 * _LANE] = logits
    slab_ref[:, 2 * _LANE:3 * _LANE] = yhat_lane

    # per-tile partials for softmax over dim=0 (the BATCH axis).  Rows beyond the
    # real batch (wrapper row padding / partial edge tile) are masked out here.
    row = jax.lax.broadcasted_iota(jnp.int32, logits.shape, 0)
    valid = (row + pl.program_id(0) * tile_b) < batch
    masked = jnp.where(valid, logits, neg_inf)
    m_tile = jnp.max(masked, axis=0, keepdims=True)             # (1, 128)
    e = jnp.where(valid, jnp.exp(logits - m_tile), 0.0)
    s_tile = jnp.sum(e, axis=0, keepdims=True)                  # (1, 128)
    mpart_ref[...] = jnp.broadcast_to(m_tile.reshape(1, 1, _LANE), mpart_ref.shape)
    spart_ref[...] = jnp.broadcast_to(s_tile.reshape(1, 1, _LANE), spart_ref.shape)


def _softmax_norm_kernel(logits_ref, m_ref, inv_s_ref, prob_ref):
    # logits_ref is the (TB, 128) logits chunk of the packed slab (columns 128:256).
    prob_ref[...] = jnp.exp(logits_ref[...] - m_ref[...]) * inv_s_ref[...]


def first_model_mnist_forward(x_nchw, params, *, tb_max=_TB_MAX):
    """x_nchw: (B, 1, 28, 28) float32.  Returns (features, logits, prob, Y_hat)."""
    assert tb_max % 16 == 0
    w1, b1, w2, b2, w3, b3 = params
    B = x_nchw.shape[0]
    F = 1
    for d in x_nchw.shape[1:]:
        F *= d
    H1, H2, C = w1.shape[1], w2.shape[1], w3.shape[1]
    assert max(H1, H2, C) <= _LANE

    # ---- glue: flatten, bf16-cast the big x stream, zero-pad params to 128 lanes ----
    x = jnp.reshape(x_nchw, (B, F)).astype(jnp.bfloat16)
    B_pad = _round_up(B, 16)                      # bf16 sublane tile
    if B_pad != B:
        x = jnp.pad(x, ((0, B_pad - B), (0, 0)))

    w1p = jnp.pad(w1, ((0, 0), (0, _LANE - H1))).astype(jnp.bfloat16)
    b1p = jnp.pad(jnp.reshape(b1, (1, H1)), ((0, 0), (0, _LANE - H1))).astype(jnp.float32)
    w2p = jnp.pad(w2, ((0, _LANE - H1), (0, _LANE - H2))).astype(jnp.float32)
    b2p = jnp.pad(jnp.reshape(b2, (1, H2)), ((0, 0), (0, _LANE - H2))).astype(jnp.float32)
    w3p = jnp.pad(w3, ((0, _LANE - H2), (0, _LANE - C))).astype(jnp.float32)
    b3p = jnp.pad(jnp.reshape(b3, (1, C)), ((0, 0), (0, _LANE - C))).astype(jnp.float32)

    TB = min(tb_max, B_pad)
    T = pl.cdiv(B_pad, TB)
    cparams = pltpu.CompilerParams(dimension_semantics=("parallel",))
    const2 = lambda i: (0, 0)

    # ---- pass 1: batch-tiled fused MLP + packed outputs + softmax partials ----
    slab, m_part, s_part = pl.pallas_call(
        functools.partial(_mlp_fwd_kernel, batch=B, n_classes=C, tile_b=TB),
        grid=(T,),
        in_specs=[
            pl.BlockSpec((TB, F), lambda i: (i, 0)),     # x: streamed per tile (bf16)
            pl.BlockSpec((F, _LANE), const2),            # weights/biases: VMEM-resident
            pl.BlockSpec((1, _LANE), const2),
            pl.BlockSpec((_LANE, _LANE), const2),
            pl.BlockSpec((1, _LANE), const2),
            pl.BlockSpec((_LANE, _LANE), const2),
            pl.BlockSpec((1, _LANE), const2),
        ],
        out_specs=(
            pl.BlockSpec((TB, 3 * _LANE), lambda i: (i, 0)),
            pl.BlockSpec((1, 8, _LANE), lambda i: (i, 0, 0)),
            pl.BlockSpec((1, 8, _LANE), lambda i: (i, 0, 0)),
        ),
        out_shape=(
            jax.ShapeDtypeStruct((B_pad, 3 * _LANE), jnp.float32),
            jax.ShapeDtypeStruct((T, 8, _LANE), jnp.float32),
            jax.ShapeDtypeStruct((T, 8, _LANE), jnp.float32),
        ),
        compiler_params=cparams,
    )(x, w1p, b1p, w2p, b2p, w3p, b3p)

    # ---- tiny cross-tile reduce for the dim=0 softmax (T x 128 floats, plain XLA) ----
    m_t = m_part[:, 0, :]                                        # (T, 128)
    s_t = s_part[:, 0, :]
    m_g = jnp.max(m_t, axis=0, keepdims=True)                    # (1, 128)
    s_g = jnp.sum(s_t * jnp.exp(m_t - m_g), axis=0, keepdims=True)
    inv_s = 1.0 / s_g

    # ---- pass 2: lane-dense normalize prob = exp(logits - m) / s ----
    prob_pad = pl.pallas_call(
        _softmax_norm_kernel,
        grid=(T,),
        in_specs=[
            pl.BlockSpec((TB, _LANE), lambda i: (i, 1)),   # logits chunk of the slab
            pl.BlockSpec((1, _LANE), const2),
            pl.BlockSpec((1, _LANE), const2),
        ],
        out_specs=pl.BlockSpec((TB, _LANE), lambda i: (i, 0)),
        out_shape=jax.ShapeDtypeStruct((B_pad, _LANE), jnp.float32),
        compiler_params=cparams,
    )(slab, m_g, inv_s)

    # ---- glue: unpack the lane-dense slab ----
    features = slab[:B, 0:H2]
    logits = slab[:B, _LANE:_LANE + C]
    prob = prob_pad[:B, 0:C]
    y_hat = slab[:B, 2 * _LANE:2 * _LANE + 1].astype(jnp.int32)
    return features, logits, prob, y_hat


def init_params(key, n_classes):
    """Deterministic parameter init mirroring nn.Linear shapes (stored (in, out))."""
    k1, k2, k3, k4, k5, k6 = jax.random.split(key, 6)

    def lin(kw, kb, fan_in, fan_out):
        bound = 1.0 / jnp.sqrt(fan_in)
        w = jax.random.uniform(kw, (fan_in, fan_out), jnp.float32, -bound, bound)
        b = jax.random.uniform(kb, (1, fan_out), jnp.float32, -bound, bound)
        return w, b

    w1, b1 = lin(k1, k2, 28 * 28, 64)
    w2, b2 = lin(k3, k4, 64, 32)
    w3, b3 = lin(k5, k6, 32, n_classes)
    return (w1, b1, w2, b2, w3, b3)


def _reference_forward(x_nchw, params):
    """Plain JAX reference with the same bf16 x/w1 streaming (f32 accumulation)."""
    w1, b1, w2, b2, w3, b3 = params
    B = x_nchw.shape[0]
    xf = jnp.reshape(x_nchw, (B, -1)).astype(jnp.bfloat16)
    h1 = jnp.maximum(jnp.dot(xf, w1.astype(jnp.bfloat16),
                             preferred_element_type=jnp.float32) + b1, 0.0)
    h2 = jnp.maximum(jnp.dot(h1, w2, preferred_element_type=jnp.float32) + b2, 0.0)
    lg = jnp.dot(h2, w3, preferred_element_type=jnp.float32) + b3
    pr = jax.nn.softmax(lg, axis=0)           # softmax over the BATCH axis, as in torch
    yh = jnp.argmax(lg, axis=1, keepdims=True).astype(jnp.int32)
    return h2, lg, pr, yh


if __name__ == "__main__":
    n_classes = 10
    key = jax.random.PRNGKey(0)
    k_params, k_x = jax.random.split(key)
    params = init_params(k_params, n_classes)

    def run_check(batch, tb_max):
        kx = jax.random.fold_in(k_x, batch)
        x = jax.random.normal(kx, (batch, 1, 28, 28), dtype=jnp.float32)
        outs = first_model_mnist_forward(x, params, tb_max=tb_max)
        jax.block_until_ready(outs)
        features, logits, prob, y_hat = outs

        assert features.shape == (batch, 32)
        assert logits.shape == (batch, n_classes)
        assert prob.shape == (batch, n_classes)
        assert y_hat.shape == (batch, 1)

        f_ref, l_ref, p_ref, _ = _reference_forward(x, params)
        assert jnp.allclose(features, f_ref, atol=1e-3, rtol=1e-3)
        assert jnp.allclose(logits, l_ref, atol=1e-3, rtol=1e-3)
        assert jnp.allclose(prob, p_ref, atol=1e-3, rtol=1e-3)
        # argmax validated against the kernel's own logits (no float-tie ambiguity)
        assert jnp.array_equal(
            y_hat, jnp.argmax(logits, axis=1, keepdims=True).astype(jnp.int32))

    run_check(batch=2, tb_max=_TB_MAX)   # single-tile path (toy demo size)
    run_check(batch=37, tb_max=16)       # multi-tile path: 3 tiles, row masking,
                                         # cross-tile batch-axis softmax reduce
    print("KERNEL_OK")
</pallas_src>

<mosaic_0001>
module attributes {stable_mosaic.version = 11 : i64} {
  func.func @_mlp_fwd_kernel(%arg0: i32, %arg1: memref<16x784xbf16, #tpu.memory_space<vmem>>, %arg2: memref<784x128xbf16, #tpu.memory_space<vmem>>, %arg3: memref<1x128xf32, #tpu.memory_space<vmem>>, %arg4: memref<128x128xf32, #tpu.memory_space<vmem>>, %arg5: memref<1x128xf32, #tpu.memory_space<vmem>>, %arg6: memref<128x128xf32, #tpu.memory_space<vmem>>, %arg7: memref<1x128xf32, #tpu.memory_space<vmem>>, %arg8: memref<16x384xf32, #tpu.memory_space<vmem>>, %arg9: memref<1x8x128xf32, #tpu.memory_space<vmem>>, %arg10: memref<1x8x128xf32, #tpu.memory_space<vmem>>) attributes {dimension_semantics = [#tpu.dimension_semantics<parallel>], iteration_bounds = array<i64: 1>, scalar_prefetch = 0 : i64, scratch_operands = 0 : i64, tpu.core_type = #tpu.core_type<tc>, window_params = [{transform_indices = @transform_0, window_bounds = array<i64: 16, 784>}, {pipeline_mode = #tpu.pipeline_mode<synchronous>, transform_indices = @transform_1, window_bounds = array<i64: 784, 128>}, {pipeline_mode = #tpu.pipeline_mode<synchronous>, transform_indices = @transform_2, window_bounds = array<i64: 1, 128>}, {pipeline_mode = #tpu.pipeline_mode<synchronous>, transform_indices = @transform_3, window_bounds = array<i64: 128, 128>}, {pipeline_mode = #tpu.pipeline_mode<synchronous>, transform_indices = @transform_4, window_bounds = array<i64: 1, 128>}, {pipeline_mode = #tpu.pipeline_mode<synchronous>, transform_indices = @transform_5, window_bounds = array<i64: 128, 128>}, {pipeline_mode = #tpu.pipeline_mode<synchronous>, transform_indices = @transform_6, window_bounds = array<i64: 1, 128>}, {transform_indices = @transform_7, window_bounds = array<i64: 16, 384>}, {transform_indices = @transform_8, window_bounds = array<i64: 1, 8, 128>}, {transform_indices = @transform_9, window_bounds = array<i64: 1, 8, 128>}]} {
    %c0 = arith.constant 0 : index
    %c0_0 = arith.constant 0 : index
    %0 = vector.load %arg1[%c0, %c0_0] : memref<16x784xbf16, #tpu.memory_space<vmem>>, vector<16x784xbf16>
    %c0_1 = arith.constant 0 : index
    %c0_2 = arith.constant 0 : index
    %1 = vector.load %arg2[%c0_1, %c0_2] : memref<784x128xbf16, #tpu.memory_space<vmem>>, vector<784x128xbf16>
    %cst = arith.constant dense<0.000000e+00> : vector<16x128xf32>
    %2 = tpu.matmul %0, %1, %cst {dimension_numbers = #tpu.dot_dimension_numbers<[1], [0], [0], [1], [0, 0, 1, 1], [], []>} : vector<16x784xbf16>, vector<784x128xbf16>, vector<16x128xf32> -> vector<16x128xf32>
    %c0_3 = arith.constant 0 : index
    %c0_4 = arith.constant 0 : index
    %3 = vector.load %arg3[%c0_3, %c0_4] : memref<1x128xf32, #tpu.memory_space<vmem>>, vector<1x128xf32>
    %4 = vector.broadcast %3 : vector<1x128xf32> to vector<16x128xf32>
    %5 = arith.addf %2, %4 : vector<16x128xf32>
    %cst_5 = arith.constant 0.000000e+00 : f32
    %6 = vector.broadcast %cst_5 : f32 to vector<16x128xf32>
    %7 = arith.maximumf %5, %6 : vector<16x128xf32>
    %c0_6 = arith.constant 0 : index
    %c0_7 = arith.constant 0 : index
    %8 = vector.load %arg4[%c0_6, %c0_7] : memref<128x128xf32, #tpu.memory_space<vmem>>, vector<128x128xf32>
    %cst_8 = arith.constant dense<0.000000e+00> : vector<16x128xf32>
    %9 = tpu.matmul %7, %8, %cst_8 {dimension_numbers = #tpu.dot_dimension_numbers<[1], [0], [0], [1], [0, 0, 1, 1], [], []>} : vector<16x128xf32>, vector<128x128xf32>, vector<16x128xf32> -> vector<16x128xf32>
    %c0_9 = arith.constant 0 : index
    %c0_10 = arith.constant 0 : index
    %10 = vector.load %arg5[%c0_9, %c0_10] : memref<1x128xf32, #tpu.memory_space<vmem>>, vector<1x128xf32>
    %11 = vector.broadcast %10 : vector<1x128xf32> to vector<16x128xf32>
    %12 = arith.addf %9, %11 : vector<16x128xf32>
    %cst_11 = arith.constant 0.000000e+00 : f32
    %13 = vector.broadcast %cst_11 : f32 to vector<16x128xf32>
    %14 = arith.maximumf %12, %13 : vector<16x128xf32>
    %c0_12 = arith.constant 0 : index
    %c0_13 = arith.constant 0 : index
    %15 = vector.load %arg6[%c0_12, %c0_13] : memref<128x128xf32, #tpu.memory_space<vmem>>, vector<128x128xf32>
    %cst_14 = arith.constant dense<0.000000e+00> : vector<16x128xf32>
    %16 = tpu.matmul %14, %15, %cst_14 {dimension_numbers = #tpu.dot_dimension_numbers<[1], [0], [0], [1], [0, 0, 1, 1], [], []>} : vector<16x128xf32>, vector<128x128xf32>, vector<16x128xf32> -> vector<16x128xf32>
    %c0_15 = arith.constant 0 : index
    %c0_16 = arith.constant 0 : index
    %17 = vector.load %arg7[%c0_15, %c0_16] : memref<1x128xf32, #tpu.memory_space<vmem>>, vector<1x128xf32>
    %18 = vector.broadcast %17 : vector<1x128xf32> to vector<16x128xf32>
    %19 = arith.addf %16, %18 : vector<16x128xf32>
    %20 = tpu.iota {dimensions = array<i32: 1>} : vector<16x128xi32>
    %c10_i32 = arith.constant 10 : i32
    %21 = vector.broadcast %c10_i32 : i32 to vector<16x128xi32>
    %22 = arith.cmpi slt, %20, %21 : vector<16x128xi32>
    %cst_17 = arith.constant 0xFF800000 : f32
    %23 = vector.broadcast %cst_17 : f32 to vector<16x128xf32>
    %24 = arith.select %22, %19, %23 : vector<16x128xi1>, vector<16x128xf32>
    %cst_18 = arith.constant dense<0xFF800000> : vector<16xf32>
    %25 = vector.multi_reduction <maximumf>, %24, %cst_18 [1] : vector<16x128xf32> to vector<16xf32>
    %26 = vector.shape_cast %25 : vector<16xf32> to vector<16x1xf32>
    %27 = vector.broadcast %26 : vector<16x1xf32> to vector<16x128xf32>
    %28 = arith.cmpf oeq, %24, %27 : vector<16x128xf32>
    %c128_i32 = arith.constant 128 : i32
    %29 = vector.broadcast %c128_i32 : i32 to vector<16x128xi32>
    %30 = arith.select %28, %20, %29 : vector<16x128xi1>, vector<16x128xi32>
    %cst_19 = arith.constant dense<2147483647> : vector<16xi32>
    %31 = vector.multi_reduction <minsi>, %30, %cst_19 [1] : vector<16x128xi32> to vector<16xi32>
    %32 = vector.shape_cast %31 : vector<16xi32> to vector<16x1xi32>
    %c0_i32 = arith.constant 0 : i32
    %33 = vector.broadcast %c0_i32 : i32 to vector<16x128xi32>
    %34 = arith.cmpi eq, %20, %33 : vector<16x128xi32>
    %35 = arith.sitofp %32 : vector<16x1xi32> to vector<16x1xf32>
    %cst_20 = arith.constant 0.000000e+00 : f32
    %36 = vector.shape_cast %35 : vector<16x1xf32> to vector<16x1xf32>
    %37 = vector.broadcast %36 : vector<16x1xf32> to vector<16x128xf32>
    %38 = vector.broadcast %cst_20 : f32 to vector<16x128xf32>
    %39 = arith.select %34, %37, %38 : vector<16x128xi1>, vector<16x128xf32>
    %c0_21 = arith.constant 0 : index
    %c0_22 = arith.constant 0 : index
    %40 = vector.load %arg8[%c0_21, %c0_22] : memref<16x384xf32, #tpu.memory_space<vmem>>, vector<16x128xf32>
    tpu.vector_store %arg8[%c0_21, %c0_22], %14 {strides = array<i32>} : memref<16x384xf32, #tpu.memory_space<vmem>>, vector<16x128xf32>,
    %c0_23 = arith.constant 0 : index
    %c128 = arith.constant 128 : index
    %41 = vector.load %arg8[%c0_23, %c128] : memref<16x384xf32, #tpu.memory_space<vmem>>, vector<16x128xf32>
    tpu.vector_store %arg8[%c0_23, %c128], %19 {strides = array<i32>} : memref<16x384xf32, #tpu.memory_space<vmem>>, vector<16x128xf32>,
    %c0_24 = arith.constant 0 : index
    %c256 = arith.constant 256 : index
    %42 = vector.load %arg8[%c0_24, %c256] : memref<16x384xf32, #tpu.memory_space<vmem>>, vector<16x128xf32>
    tpu.vector_store %arg8[%c0_24, %c256], %39 {strides = array<i32>} : memref<16x384xf32, #tpu.memory_space<vmem>>, vector<16x128xf32>,
    %43 = tpu.iota {dimensions = array<i32: 0>} : vector<16x128xi32>
    %c16_i32 = arith.constant 16 : i32
    %44 = arith.muli %arg0, %c16_i32 : i32
    %45 = vector.broadcast %44 : i32 to vector<16x128xi32>
    %46 = arith.addi %43, %45 : vector<16x128xi32>
    %c2_i32 = arith.constant 2 : i32
    %47 = vector.broadcast %c2_i32 : i32 to vector<16x128xi32>
    %48 = arith.cmpi slt, %46, %47 : vector<16x128xi32>
    %cst_25 = arith.constant 0xFF800000 : f32
    %49 = vector.broadcast %cst_25 : f32 to vector<16x128xf32>
    %50 = arith.select %48, %19, %49 : vector<16x128xi1>, vector<16x128xf32>
    %cst_26 = arith.constant dense<0xFF800000> : vector<128xf32>
    %51 = vector.multi_reduction <maximumf>, %50, %cst_26 [0] : vector<16x128xf32> to vector<128xf32>
    %52 = vector.shape_cast %51 : vector<128xf32> to vector<1x128xf32>
    %53 = vector.broadcast %52 : vector<1x128xf32> to vector<16x128xf32>
    %54 = arith.subf %19, %53 : vector<16x128xf32>
    %55 = math.exp %54 : vector<16x128xf32>
    %cst_27 = arith.constant 0.000000e+00 : f32
    %56 = vector.broadcast %cst_27 : f32 to vector<16x128xf32>
    %57 = arith.select %48, %55, %56 : vector<16x128xi1>, vector<16x128xf32>
    %cst_28 = arith.constant dense<0.000000e+00> : vector<128xf32>
    %58 = vector.multi_reduction <add>, %57, %cst_28 [0] : vector<16x128xf32> to vector<128xf32>
    %59 = vector.shape_cast %58 : vector<128xf32> to vector<1x128xf32>
    %60 = vector.shape_cast %52 : vector<1x128xf32> to vector<1x1x128xf32>
    %61 = vector.shape_cast %60 : vector<1x1x128xf32> to vector<1x1x128xf32>
    %62 = vector.broadcast %61 : vector<1x1x128xf32> to vector<1x8x128xf32>
    %c0_29 = arith.constant 0 : index
    %c0_30 = arith.constant 0 : index
    %c0_31 = arith.constant 0 : index
    %63 = vector.load %arg9[%c0_29, %c0_30, %c0_31] : memref<1x8x128xf32, #tpu.memory_space<vmem>>, vector<1x8x128xf32>
    tpu.vector_store %arg9[%c0_29, %c0_30, %c0_31], %62 {strides = array<i32>} : memref<1x8x128xf32, #tpu.memory_space<vmem>>, vector<1x8x128xf32>,
    %64 = vector.shape_cast %59 : vector<1x128xf32> to vector<1x1x128xf32>
    %65 = vector.shape_cast %64 : vector<1x1x128xf32> to vector<1x1x128xf32>
    %66 = vector.broadcast %65 : vector<1x1x128xf32> to vector<1x8x128xf32>
    %c0_32 = arith.constant 0 : index
    %c0_33 = arith.constant 0 : index
    %c0_34 = arith.constant 0 : index
    %67 = vector.load %arg10[%c0_32, %c0_33, %c0_34] : memref<1x8x128xf32, #tpu.memory_space<vmem>>, vector<1x8x128xf32>
    tpu.vector_store %arg10[%c0_32, %c0_33, %c0_34], %66 {strides = array<i32>} : memref<1x8x128xf32, #tpu.memory_space<vmem>>, vector<1x8x128xf32>,
    return
  }
  func.func @transform_0(%arg0: i32) -> (i32, i32) {
    %c0_i32 = arith.constant 0 : i32
    %c0_i32_0 = arith.constant 0 : i32
    return %arg0, %c0_i32 : i32, i32
  }
  func.func @transform_1(%arg0: i32) -> (i32, i32) {
    %c0_i32 = arith.constant 0 : i32
    %c0_i32_0 = arith.constant 0 : i32
    %c0_i32_1 = arith.constant 0 : i32
    return %c0_i32, %c0_i32_0 : i32, i32
  }
  func.func @transform_2(%arg0: i32) -> (i32, i32) {
    %c0_i32 = arith.constant 0 : i32
    %c0_i32_0 = arith.constant 0 : i32
    %c0_i32_1 = arith.constant 0 : i32
    return %c0_i32, %c0_i32_0 : i32, i32
  }
  func.func @transform_3(%arg0: i32) -> (i32, i32) {
    %c0_i32 = arith.constant 0 : i32
    %c0_i32_0 = arith.constant 0 : i32
    %c0_i32_1 = arith.constant 0 : i32
    return %c0_i32, %c0_i32_0 : i32, i32
  }
  func.func @transform_4(%arg0: i32) -> (i32, i32) {
    %c0_i32 = arith.constant 0 : i32
    %c0_i32_0 = arith.constant 0 : i32
    %c0_i32_1 = arith.constant 0 : i32
    return %c0_i32, %c0_i32_0 : i32, i32
  }
  func.func @transform_5(%arg0: i32) -> (i32, i32) {
    %c0_i32 = arith.constant 0 : i32
    %c0_i32_0 = arith.constant 0 : i32
    %c0_i32_1 = arith.constant 0 : i32
    return %c0_i32, %c0_i32_0 : i32, i32
  }
  func.func @transform_6(%arg0: i32) -> (i32, i32) {
    %c0_i32 = arith.constant 0 : i32
    %c0_i32_0 = arith.constant 0 : i32
    %c0_i32_1 = arith.constant 0 : i32
    return %c0_i32, %c0_i32_0 : i32, i32
  }
  func.func @transform_7(%arg0: i32) -> (i32, i32) {
    %c0_i32 = arith.constant 0 : i32
    %c0_i32_0 = arith.constant 0 : i32
    return %arg0, %c0_i32 : i32, i32
  }
  func.func @transform_8(%arg0: i32) -> (i32, i32, i32) {
    %c0_i32 = arith.constant 0 : i32
    %c0_i32_0 = arith.constant 0 : i32
    %c0_i32_1 = arith.constant 0 : i32
    return %arg0, %c0_i32, %c0_i32_0 : i32, i32, i32
  }
  func.func @transform_9(%arg0: i32) -> (i32, i32, i32) {
    %c0_i32 = arith.constant 0 : i32
    %c0_i32_0 = arith.constant 0 : i32
    %c0_i32_1 = arith.constant 0 : i32
    return %arg0, %c0_i32, %c0_i32_0 : i32, i32, i32
  }
}

</mosaic_0001>

<llo_original>
// kernel: tpu_custom_call.1
$region0: #{tpu_custom_call.1}
  #allocation0 [shape = 'u32[]', space=smem, size = 0x4, offset = 0x4, fixed_abs, tag = 'smem constant byte address 0x4 - core index']
  #allocation1 [shape = 'u32[144,128]{1,0:T(1,128)}', space=vmem, size = 0x12000, scoped, tag = 'internal scratch']
  %s0 = inlined_call_operand.hbm [shape: bf16[16,784], index: 0, kind: input, shape index: {}]
  %s1 = inlined_call_operand.hbm [shape: bf16[784,128], index: 1, kind: input, shape index: {}]
  %s2 = inlined_call_operand.vmem [shape: f32[1,128], index: 2, kind: input, shape index: {}]
  %s3 = inlined_call_operand.hbm [shape: f32[128,128], index: 3, kind: input, shape index: {}]
  %s4 = inlined_call_operand.vmem [shape: f32[1,128], index: 4, kind: input, shape index: {}]
  %s5 = inlined_call_operand.hbm [shape: f32[128,128], index: 5, kind: input, shape index: {}]
  %s6 = inlined_call_operand.vmem [shape: f32[1,128], index: 6, kind: input, shape index: {}]
  %s7 = inlined_call_operand.hbm [shape: f32[16,384], index: 7, kind: output, shape index: {0}]
  %s8 = inlined_call_operand.hbm [shape: f32[1,8,128], index: 8, kind: output, shape index: {1}]
  %s9 = inlined_call_operand.hbm [shape: f32[1,8,128], index: 9, kind: output, shape index: {2}]
  %10 = xla_tuple %s7, %s8, %s9
  %s11 = sld [smem:[#allocation0]]
  $region70: #{tpu_custom_call.1} parent=0
    _
  %s13 = ssub.s32 1, %s11
  %s14 = scalar_select 0, %s13, %s11
  $region1: #{tpu_custom_call.1} parent=0
    #allocation2 [shape = 'u8[28672]{0}', space=vmem, size = 0x7000, scoped, tag = 'input window, operand 0, single buffered']
    #allocation3 [shape = 's32[1]{0}', space=sflag, size = 0x4, scoped, tag = 'scoped memory for tpu_custom_call.1']
    #allocation4 [shape = 's32[1]{0}', space=sflag, size = 0x4, scoped, tag = 'scoped memory for tpu_custom_call.1']
    #allocation5 [shape = 'u8[200704]{0}', space=vmem, size = 0x31000, scoped, tag = 'input window, operand 1, single buffered']
    #allocation6 [shape = 's32[1]{0}', space=sflag, size = 0x4, scoped, tag = 'scoped memory for tpu_custom_call.1']
    #allocation7 [shape = 'u8[65536]{0}', space=vmem, size = 0x10000, scoped, tag = 'input window, operand 3, single buffered']
    #allocation8 [shape = 'u8[65536]{0}', space=vmem, size = 0x10000, scoped, tag = 'input window, operand 5, single buffered']
    #allocation9 [shape = 's32[1]{0}', space=sflag, size = 0x4, scoped, tag = 'scoped memory for tpu_custom_call.1']
    #allocation10 [shape = 'u8[24576]{0}', space=vmem, size = 0x6000, scoped, tag = 'output window, operand 0, single buffered']
    #allocation11 [shape = 'u8[4096]{0}', space=vmem, size = 0x1000, scoped, tag = 'output window, operand 1, single buffered']
    #allocation12 [shape = 's32[1]{0}', space=sflag, size = 0x4, scoped, tag = 'scoped memory for tpu_custom_call.1']
    #allocation13 [shape = 'u8[4096]{0}', space=vmem, size = 0x1000, scoped, tag = 'output window, operand 2, single buffered']
    %15 = vsyncpa [#allocation3], 0
    %16 = vsyncpa [#allocation6], 0
    %17 = vsyncpa [#allocation9], 0
    %18 = vsyncpa [#allocation4], 0
    %19 = vsyncpa [#allocation12], 0
    // Predicated region
    $region2: #{tpu_custom_call.1} parent=1 // pred_check
      _
    $region3: #{tpu_custom_call.1} parent=1 // pred_check_branch
      %21 = sbr.rel (0) target = $region5
    $region4: #{tpu_custom_call.1} parent=1 // pred_region
      %s23 = ssub.s32 896, 896
      %24 = vsyncadd [#allocation3], %s23
      %s25 = sshll.u32 [#allocation2], 4
      %s26 = int_to_ptr.vmem [resolvable:$true] %s25
      %31 = dma.hbm_to_vmem [thread:$0]  %s0, 896, %s26, [#allocation3], 448, 448, 28
    $region5: #{tpu_custom_call.1} parent=1 // pred_fallthru
      _
    // Predicated region
    $region6: #{tpu_custom_call.1} parent=1 // pred_check
      _
    $region7: #{tpu_custom_call.1} parent=1 // pred_check_branch
      %33 = sbr.rel (0) target = $region9
    $region8: #{tpu_custom_call.1} parent=1 // pred_region
      %s35 = ssub.s32 6272, 6272
      %36 = vsyncadd [#allocation6], %s35
      %s37 = sshll.u32 [#allocation5], 4
      %s38 = int_to_ptr.vmem [resolvable:$true] %s37
      %43 = dma.hbm_to_vmem [thread:$0]  %s1, 6272, %s38, [#allocation6], 64, 64, 4
    $region9: #{tpu_custom_call.1} parent=1 // pred_fallthru
      _
    // Predicated region
    $region10: #{tpu_custom_call.1} parent=1 // pred_check
      _
    $region11: #{tpu_custom_call.1} parent=1 // pred_check_branch
      %45 = sbr.rel (0) target = $region13
    $region12: #{tpu_custom_call.1} parent=1 // pred_region
      _
    $region13: #{tpu_custom_call.1} parent=1 // pred_fallthru
      _
    // Predicated region
    $region14: #{tpu_custom_call.1} parent=1 // pred_check
      _
    $region15: #{tpu_custom_call.1} parent=1 // pred_check_branch
      %47 = sbr.rel (0) target = $region17
    $region16: #{tpu_custom_call.1} parent=1 // pred_region
      %s49 = ssub.s32 2048, 2048
      %50 = vsyncadd [#allocation6], %s49
      %s51 = sshll.u32 [#allocation7], 4
      %s52 = int_to_ptr.vmem [resolvable:$true] %s51
      %57 = dma.hbm_to_vmem [thread:$0]  %s3, 2048, %s52, [#allocation6], 128, 128, 8
    $region17: #{tpu_custom_call.1} parent=1 // pred_fallthru
      _
    // Predicated region
    $region18: #{tpu_custom_call.1} parent=1 // pred_check
      _
    $region19: #{tpu_custom_call.1} parent=1 // pred_check_branch
      %59 = sbr.rel (0) target = $region21
    $region20: #{tpu_custom_call.1} parent=1 // pred_region
      _
    $region21: #{tpu_custom_call.1} parent=1 // pred_fallthru
      _
    // Predicated region
    $region22: #{tpu_custom_call.1} parent=1 // pred_check
      _
    $region23: #{tpu_custom_call.1} parent=1 // pred_check_branch
      %61 = sbr.rel (0) target = $region25
    $region24: #{tpu_custom_call.1} parent=1 // pred_region
      %s63 = ssub.s32 2048, 2048
      %64 = vsyncadd [#allocation9], %s63
      %s65 = sshll.u32 [#allocation8], 4
      %s66 = int_to_ptr.vmem [resolvable:$true] %s65
      %71 = dma.hbm_to_vmem [thread:$0]  %s5, 2048, %s66, [#allocation9], 128, 128, 8
    $region25: #{tpu_custom_call.1} parent=1 // pred_fallthru
      _
    // Predicated region
    $region26: #{tpu_custom_call.1} parent=1 // pred_check
      _
    $region27: #{tpu_custom_call.1} parent=1 // pred_check_branch
      %73 = sbr.rel (0) target = $region29
    $region28: #{tpu_custom_call.1} parent=1 // pred_region
      _
    $region29: #{tpu_custom_call.1} parent=1 // pred_fallthru
      _
    // Predicated region
    $region30: #{tpu_custom_call.1} parent=1 // pred_check
      _
    $region31: #{tpu_custom_call.1} parent=1 // pred_check_branch
      %75 = sbr.rel (0) target = $region33
    $region32: #{tpu_custom_call.1} parent=1 // pred_region
      %76 = dma.done [#allocation3], 896
    $region33: #{tpu_custom_call.1} parent=1 // pred_fallthru
      _
    // Predicated region
    $region34: #{tpu_custom_call.1} parent=1 // pred_check
      _
    $region35: #{tpu_custom_call.1} parent=1 // pred_check_branch
      %78 = sbr.rel (0) target = $region37
    $region36: #{tpu_custom_call.1} parent=1 // pred_region
      %79 = dma.done [#allocation6], 6272
    $region37: #{tpu_custom_call.1} parent=1 // pred_fallthru
      _
    // Predicated region
    $region38: #{tpu_custom_call.1} parent=1 // pred_check
      _
    $region39: #{tpu_custom_call.1} parent=1 // pred_check_branch
      %81 = sbr.rel (0) target = $region41
    $region40: #{tpu_custom_call.1} parent=1 // pred_region
      %82 = dma.done [#allocation6], 2048
    $region41: #{tpu_custom_call.1} parent=1 // pred_fallthru
      _
    // Predicated region
    $region42: #{tpu_custom_call.1} parent=1 // pred_check
      _
    $region43: #{tpu_custom_call.1} parent=1 // pred_check_branch
      %84 = sbr.rel (0) target = $region45
    $region44: #{tpu_custom_call.1} parent=1 // pred_region
      %85 = dma.done [#allocation9], 2048
    $region45: #{tpu_custom_call.1} parent=1 // pred_fallthru
      _
    %v87 = vld [vmem:[#allocation2] sm:$0xff]
    %v88 = vld [vmem:[#allocation2 + $0x8] sm:$0xff]
    %v89 = vld [vmem:[#allocation2 + $0x10] sm:$0xff]
    %v90 = vld [vmem:[#allocation2 + $0x18] sm:$0xf]
    %v91 = vld [vmem:[#allocation2 + $0x1c] sm:$0xff]
    %v92 = vld [vmem:[#allocation2 + $0x24] sm:$0xff]
    %v93 = vld [vmem:[#allocation2 + $0x2c] sm:$0xff]
    %v94 = vld [vmem:[#allocation2 + $0x34] sm:$0xf]
    %v95 = vld [vmem:[#allocation5] sm:$0xf]
    %v96 = vld [vmem:[#allocation5 + $0x4] sm:$0xf]
    %v97 = vld [vmem:[#allocation5 + $0x8] sm:$0xf]
    %v98 = vld [vmem:[#allocation5 + $0xc] sm:$0xf]
    %v99 = vld [vmem:[#allocation5 + $0x10] sm:$0xf]
    %v100 = vld [vmem:[#allocation5 + $0x14] sm:$0xf]
    %v101 = vld [vmem:[#allocation5 + $0x18] sm:$0xf]
    %v102 = vld [vmem:[#allocation5 + $0x1c] sm:$0xf]
    %v103 = vld [vmem:[#allocation5 + $0x20] sm:$0xf]
    %v104 = vld [vmem:[#allocation5 + $0x24] sm:$0xf]
    %v105 = vld [vmem:[#allocation5 + $0x28] sm:$0xf]
    %v106 = vld [vmem:[#allocation5 + $0x2c] sm:$0xf]
    %v107 = vld [vmem:[#allocation5 + $0x30] sm:$0xf]
    %v108 = vld [vmem:[#allocation5 + $0x34] sm:$0xf]
    %v109 = vld [vmem:[#allocation5 + $0x38] sm:$0xf]
    %v110 = vld [vmem:[#allocation5 + $0x3c] sm:$0xf]
    %v111 = vld [vmem:[#allocation5 + $0x40] sm:$0xf]
    %v112 = vld [vmem:[#allocation5 + $0x44] sm:$0xf]
    %v113 = vld [vmem:[#allocation5 + $0x48] sm:$0xf]
    %v114 = vld [vmem:[#allocation5 + $0x4c] sm:$0xf]
    %v115 = vld [vmem:[#allocation5 + $0x50] sm:$0xf]
    %v116 = vld [vmem:[#allocation5 + $0x54] sm:$0xf]
    %v117 = vld [vmem:[#allocation5 + $0x58] sm:$0xf]
    %v118 = vld [vmem:[#allocation5 + $0x5c] sm:$0xf]
    %v119 = vld [vmem:[#allocation5 + $0x60] sm:$0xf]
    %v120 = vld [vmem:[#allocation5 + $0x64] sm:$0xf]
    %v121 = vld [vmem:[#allocation5 + $0x68] sm:$0xf]
    %v122 = vld [vmem:[#allocation5 + $0x6c] sm:$0xf]
    %v123 = vld [vmem:[#allocation5 + $0x70] sm:$0xf]
    %v124 = vld [vmem:[#allocation5 + $0x74] sm:$0xf]
    %v125 = vld [vmem:[#allocation5 + $0x78] sm:$0xf]
    %v126 = vld [vmem:[#allocation5 + $0x7c] sm:$0xf]
    %v127 = vld [vmem:[#allocation5 + $0x80] sm:$0xf]
    %v128 = vld [vmem:[#allocation5 + $0x84] sm:$0xf]
    %v129 = vld [vmem:[#allocation5 + $0x88] sm:$0xf]
    %v130 = vld [vmem:[#allocation5 + $0x8c] sm:$0xf]
    %v131 = vld [vmem:[#allocation5 + $0x90] sm:$0xf]
    %v132 = vld [vmem:[#allocation5 + $0x94] sm:$0xf]
    %v133 = vld [vmem:[#allocation5 + $0x98] sm:$0xf]
    %v134 = vld [vmem:[#allocation5 + $0x9c] sm:$0xf]
    %v135 = vld [vmem:[#allocation5 + $0xa0] sm:$0xf]
    %v136 = vld [vmem:[#allocation5 + $0xa4] sm:$0xf]
    %v137 = vld [vmem:[#allocation5 + $0xa8] sm:$0xf]
    %v138 = vld [vmem:[#allocation5 + $0xac] sm:$0xf]
    %v139 = vld [vmem:[#allocation5 + $0xb0] sm:$0xf]
    %v140 = vld [vmem:[#allocation5 + $0xb4] sm:$0xf]
    %v141 = vld [vmem:[#allocation5 + $0xb8] sm:$0xf]
    %v142 = vld [vmem:[#allocation5 + $0xbc] sm:$0xf]
    %v143 = vld [vmem:[#allocation5 + $0xc0] sm:$0xf]
    %v144 = vld [vmem:[#allocation5 + $0xc4] sm:$0xf]
    %v145 = vld [vmem:[#allocation5 + $0xc8] sm:$0xf]
    %v146 = vld [vmem:[#allocation5 + $0xcc] sm:$0xf]
    %v147 = vld [vmem:[#allocation5 + $0xd0] sm:$0xf]
    %v148 = vld [vmem:[#allocation5 + $0xd4] sm:$0xf]
    %v149 = vld [vmem:[#allocation5 + $0xd8] sm:$0xf]
    %v150 = vld [vmem:[#allocation5 + $0xdc] sm:$0xf]
    %v151 = vld [vmem:[#allocation5 + $0xe0] sm:$0xf]
    %v152 = vld [vmem:[#allocation5 + $0xe4] sm:$0xf]
    %v153 = vld [vmem:[#allocation5 + $0xe8] sm:$0xf]
    %v154 = vld [vmem:[#allocation5 + $0xec] sm:$0xf]
    %v155 = vld [vmem:[#allocation5 + $0xf0] sm:$0xf]
    %v156 = vld [vmem:[#allocation5 + $0xf4] sm:$0xf]
    %v157 = vld [vmem:[#allocation5 + $0xf8] sm:$0xf]
    %v158 = vld [vmem:[#allocation5 + $0xfc] sm:$0xf]
    %v159 = vld [vmem:[#allocation5 + $0x100] sm:$0xf]
    %v160 = vld [vmem:[#allocation5 + $0x104] sm:$0xf]
    %v161 = vld [vmem:[#allocation5 + $0x108] sm:$0xf]
    %v162 = vld [vmem:[#allocation5 + $0x10c] sm:$0xf]
    %v163 = vld [vmem:[#allocation5 + $0x110] sm:$0xf]
    %v164 = vld [vmem:[#allocation5 + $0x114] sm:$0xf]
    %v165 = vld [vmem:[#allocation5 + $0x118] sm:$0xf]
    %v166 = vld [vmem:[#allocation5 + $0x11c] sm:$0xf]
    %v167 = vld [vmem:[#allocation5 + $0x120] sm:$0xf]
    %v168 = vld [vmem:[#allocation5 + $0x124] sm:$0xf]
    %v169 = vld [vmem:[#allocation5 + $0x128] sm:$0xf]
    %v170 = vld [vmem:[#allocation5 + $0x12c] sm:$0xf]
    %v171 = vld [vmem:[#allocation5 + $0x130] sm:$0xf]
    %v172 = vld [vmem:[#allocation5 + $0x134] sm:$0xf]
    %v173 = vld [vmem:[#allocation5 + $0x138] sm:$0xf]
    %v174 = vld [vmem:[#allocation5 + $0x13c] sm:$0xf]
    %v175 = vld [vmem:[#allocation5 + $0x140] sm:$0xf]
    %v176 = vld [vmem:[#allocation5 + $0x144] sm:$0xf]
    %v177 = vld [vmem:[#allocation5 + $0x148] sm:$0xf]
    %v178 = vld [vmem:[#allocation5 + $0x14c] sm:$0xf]
    %v179 = vld [vmem:[#allocation5 + $0x150] sm:$0xf]
    %v180 = vld [vmem:[#allocation5 + $0x154] sm:$0xf]
    %v181 = vld [vmem:[#allocation5 + $0x158] sm:$0xf]
    %v182 = vld [vmem:[#allocation5 + $0x15c] sm:$0xf]
    %v183 = vld [vmem:[#allocation5 + $0x160] sm:$0xf]
    %v184 = vld [vmem:[#allocation5 + $0x164] sm:$0xf]
    %v185 = vld [vmem:[#allocation5 + $0x168] sm:$0xf]
    %v186 = vld [vmem:[#allocation5 + $0x16c] sm:$0xf]
    %v187 = vld [vmem:[#allocation5 + $0x170] sm:$0xf]
    %v188 = vld [vmem:[#allocation5 + $0x174] sm:$0xf]
    %v189 = vld [vmem:[#allocation5 + $0x178] sm:$0xf]
    %v190 = vld [vmem:[#allocation5 + $0x17c] sm:$0xf]
    %v191 = vld [vmem:[#allocation5 + $0x180] sm:$0xf]
    %v192 = vld [vmem:[#allocation5 + $0x184] sm:$0xf]
    %v193 = vld [vmem:[%s2] sm:$0x1]
    %v195 = vlaneseq
    %v196 = vshrl.u32 %v195, 7
    %v197 = vsub.s32 0, %v196
    %v198 = vrot.slane %v193, %v197
    %v208 = vunpack.c.l.b16 %v87
    %v209 = vunpack.c.h.b16 %v87
    %v210 = vunpack.c.l.b16 %v88
    %v211 = vunpack.c.h.b16 %v88
    %v212 = vunpack.c.l.b16 %v89
    %v213 = vunpack.c.h.b16 %v89
    %v214 = vunpack.c.l.b16 %v90
    %v215 = vunpack.c.l.b16 %v91
    %v216 = vunpack.c.h.b16 %v91
    %v217 = vunpack.c.l.b16 %v92
    %v218 = vunpack.c.h.b16 %v92
    %v219 = vunpack.c.l.b16 %v93
    %v220 = vunpack.c.h.b16 %v93
    %v221 = vunpack.c.l.b16 %v94
    %v222 = vpack.c.b16 %v215, %v208
    %v223 = vpack.c.b16 %v216, %v209
    %v224 = vpack.c.b16 %v217, %v210
    %v225 = vpack.c.b16 %v218, %v211
    %v226 = vpack.c.b16 %v219, %v212
    %v227 = vpack.c.b16 %v220, %v213
    %v228 = vpack.c.b16 %v221, %v214
    %v333 = vunpack.c.l.b16 %v95
    %v334 = vunpack.c.l.b16 %v96
    %v335 = vunpack.c.l.b16 %v97
    %v336 = vunpack.c.l.b16 %v98
    %v337 = vunpack.c.l.b16 %v99
    %v338 = vunpack.c.l.b16 %v100
    %v339 = vunpack.c.l.b16 %v101
    %v340 = vunpack.c.l.b16 %v102
    %v341 = vunpack.c.l.b16 %v103
    %v342 = vunpack.c.l.b16 %v104
    %v343 = vunpack.c.l.b16 %v105
    %v344 = vunpack.c.l.b16 %v106
    %v345 = vunpack.c.l.b16 %v107
    %v346 = vunpack.c.l.b16 %v108
    %v347 = vunpack.c.l.b16 %v109
    %v348 = vunpack.c.l.b16 %v110
    %v349 = vunpack.c.l.b16 %v111
    %v350 = vunpack.c.l.b16 %v112
    %v351 = vunpack.c.l.b16 %v113
    %v352 = vunpack.c.l.b16 %v114
    %v353 = vunpack.c.l.b16 %v115
    %v354 = vunpack.c.l.b16 %v116
    %v355 = vunpack.c.l.b16 %v117
    %v356 = vunpack.c.l.b16 %v118
    %v357 = vunpack.c.l.b16 %v119
    %v358 = vunpack.c.l.b16 %v120
    %v359 = vunpack.c.l.b16 %v121
    %v360 = vunpack.c.l.b16 %v122
    %v361 = vunpack.c.l.b16 %v123
    %v362 = vunpack.c.l.b16 %v124
    %v363 = vunpack.c.l.b16 %v125
    %v364 = vunpack.c.l.b16 %v126
    %v365 = vunpack.c.l.b16 %v127
    %v366 = vunpack.c.l.b16 %v128
    %v367 = vunpack.c.l.b16 %v129
    %v368 = vunpack.c.l.b16 %v130
    %v369 = vunpack.c.l.b16 %v131
    %v370 = vunpack.c.l.b16 %v132
    %v371 = vunpack.c.l.b16 %v133
    %v372 = vunpack.c.l.b16 %v134
    %v373 = vunpack.c.l.b16 %v135
    %v374 = vunpack.c.l.b16 %v136
    %v375 = vunpack.c.l.b16 %v137
    %v376 = vunpack.c.l.b16 %v138
    %v377 = vunpack.c.l.b16 %v139
    %v378 = vunpack.c.l.b16 %v140
    %v379 = vunpack.c.l.b16 %v141
    %v380 = vunpack.c.l.b16 %v142
    %v381 = vunpack.c.l.b16 %v143
    %v382 = vunpack.c.l.b16 %v144
    %v383 = vunpack.c.l.b16 %v145
    %v384 = vunpack.c.l.b16 %v146
    %v385 = vunpack.c.l.b16 %v147
    %v386 = vunpack.c.l.b16 %v148
    %v387 = vunpack.c.l.b16 %v149
    %v388 = vunpack.c.l.b16 %v150
    %v389 = vunpack.c.l.b16 %v151
    %v390 = vunpack.c.l.b16 %v152
    %v391 = vunpack.c.l.b16 %v153
    %v392 = vunpack.c.l.b16 %v154
    %v393 = vunpack.c.l.b16 %v155
    %v394 = vunpack.c.l.b16 %v156
    %v395 = vunpack.c.l.b16 %v157
    %v396 = vunpack.c.l.b16 %v158
    %v397 = vunpack.c.l.b16 %v159
    %v398 = vunpack.c.l.b16 %v160
    %v399 = vunpack.c.l.b16 %v161
    %v400 = vunpack.c.l.b16 %v162
    %v401 = vunpack.c.l.b16 %v163
    %v402 = vunpack.c.l.b16 %v164
    %v403 = vunpack.c.l.b16 %v165
    %v404 = vunpack.c.l.b16 %v166
    %v405 = vunpack.c.l.b16 %v167
    %v406 = vunpack.c.l.b16 %v168
    %v407 = vunpack.c.l.b16 %v169
    %v408 = vunpack.c.l.b16 %v170
    %v409 = vunpack.c.l.b16 %v171
    %v410 = vunpack.c.l.b16 %v172
    %v411 = vunpack.c.l.b16 %v173
    %v412 = vunpack.c.l.b16 %v174
    %v413 = vunpack.c.l.b16 %v175
    %v414 = vunpack.c.l.b16 %v176
    %v415 = vunpack.c.l.b16 %v177
    %v416 = vunpack.c.l.b16 %v178
    %v417 = vunpack.c.l.b16 %v179
    %v418 = vunpack.c.l.b16 %v180
    %v419 = vunpack.c.l.b16 %v181
    %v420 = vunpack.c.l.b16 %v182
    %v421 = vunpack.c.l.b16 %v183
    %v422 = vunpack.c.l.b16 %v184
    %v423 = vunpack.c.l.b16 %v185
    %v424 = vunpack.c.l.b16 %v186
    %v425 = vunpack.c.l.b16 %v187
    %v426 = vunpack.c.l.b16 %v188
    %v427 = vunpack.c.l.b16 %v189
    %v428 = vunpack.c.l.b16 %v190
    %v429 = vunpack.c.l.b16 %v191
    %v430 = vunpack.c.l.b16 %v192
    %v431 = vpack.c.b16 %v334, %v333
    %v432 = vpack.c.b16 %v336, %v335
    %v433 = vpack.c.b16 %v338, %v337
    %v434 = vpack.c.b16 %v340, %v339
    %v435 = vpack.c.b16 %v342, %v341
    %v436 = vpack.c.b16 %v344, %v343
    %v437 = vpack.c.b16 %v346, %v345
    %v438 = vpack.c.b16 %v348, %v347
    %v439 = vpack.c.b16 %v350, %v349
    %v440 = vpack.c.b16 %v352, %v351
    %v441 = vpack.c.b16 %v354, %v353
    %v442 = vpack.c.b16 %v356, %v355
    %v443 = vpack.c.b16 %v358, %v357
    %v444 = vpack.c.b16 %v360, %v359
    %v445 = vpack.c.b16 %v362, %v361
    %v446 = vpack.c.b16 %v364, %v363
    %v447 = vpack.c.b16 %v366, %v365
    %v448 = vpack.c.b16 %v368, %v367
    %v449 = vpack.c.b16 %v370, %v369
    %v450 = vpack.c.b16 %v372, %v371
    %v451 = vpack.c.b16 %v374, %v373
    %v452 = vpack.c.b16 %v376, %v375
    %v453 = vpack.c.b16 %v378, %v377
    %v454 = vpack.c.b16 %v380, %v379
    %v455 = vpack.c.b16 %v382, %v381
    %v456 = vpack.c.b16 %v384, %v383
    %v457 = vpack.c.b16 %v386, %v385
    %v458 = vpack.c.b16 %v388, %v387
    %v459 = vpack.c.b16 %v390, %v389
    %v460 = vpack.c.b16 %v392, %v391
    %v461 = vpack.c.b16 %v394, %v393
    %v462 = vpack.c.b16 %v396, %v395
    %v463 = vpack.c.b16 %v398, %v397
    %v464 = vpack.c.b16 %v400, %v399
    %v465 = vpack.c.b16 %v402, %v401
    %v466 = vpack.c.b16 %v404, %v403
    %v467 = vpack.c.b16 %v406, %v405
    %v468 = vpack.c.b16 %v408, %v407
    %v469 = vpack.c.b16 %v410, %v409
    %v470 = vpack.c.b16 %v412, %v411
    %v471 = vpack.c.b16 %v414, %v413
    %v472 = vpack.c.b16 %v416, %v415
    %v473 = vpack.c.b16 %v418, %v417
    %v474 = vpack.c.b16 %v420, %v419
    %v475 = vpack.c.b16 %v422, %v421
    %v476 = vpack.c.b16 %v424, %v423
    %v477 = vpack.c.b16 %v426, %v425
    %v478 = vpack.c.b16 %v428, %v427
    %v479 = vpack.c.b16 %v430, %v429
    %vm529 = vcmask 130048
    %v531 = vsel %vm529, %v228, 0
    %533 = vmatprep.subr.bf16.mxu0 0
    %534 = vmatpush1.bf16.msra.mxu0 %v438
    %535 = vmatprep.subr.bf16.mxu0 0
    %536 = vmatpush1.bf16.msra.mxu0 %v437
    %537 = vmatprep.subr.bf16.mxu0 0
    %538 = vmatpush1.bf16.msra.mxu0 %v436
    %539 = vmatprep.subr.bf16.mxu0 0
    %540 = vmatpush1.bf16.msra.mxu0 %v435
    %541 = vmatprep.subr.bf16.mxu0 0
    %542 = vmatpush1.bf16.msra.mxu0 %v434
    %543 = vmatprep.subr.bf16.mxu0 0
    %544 = vmatpush1.bf16.msra.mxu0 %v433
    %545 = vmatprep.subr.bf16.mxu0 0
    %546 = vmatpush1.bf16.msra.mxu0 %v432
    %547 = vmatprep.subr.bf16.mxu0 0
    %548 = vmatpush1.bf16.msra.mxu0 %v431
    %549 = vmatprep.subr.bf16.mxu0 0
    %550 = vmatpush2.bf16.msra.mxu0 %v446
    %551 = vmatprep.subr.bf16.mxu0 0
    %552 = vmatpush2.bf16.msra.mxu0 %v445
    %553 = vmatprep.subr.bf16.mxu0 0
    %554 = vmatpush2.bf16.msra.mxu0 %v444
    %555 = vmatprep.subr.bf16.mxu0 0
    %556 = vmatpush2.bf16.msra.mxu0 %v443
    %557 = vmatprep.subr.bf16.mxu0 0
    %558 = vmatpush2.bf16.msra.mxu0 %v442
    %559 = vmatprep.subr.bf16.mxu0 0
    %560 = vmatpush2.bf16.msra.mxu0 %v441
    %561 = vmatprep.subr.bf16.mxu0 0
    %562 = vmatpush2.bf16.msra.mxu0 %v440
    %563 = vmatprep.subr.bf16.mxu0 0
    %564 = vmatpush2.bf16.msra.mxu0 %v439
    %565 = vmatprep.mubr.bf16.mxu0 %v223
    %566 = vmatmul.mubr.bf16.gmra.mxu0 %v222
    %v567 = vpop.f32.mrf.mxu0
    %v568 = vadd.f32 %v198, %v567
    %v569 = vpop.f32.mrf.mxu0
    %v570 = vpop.f32.mrf.mxu0
    %v571 = vadd.f32 %v198, %v570
    %v572 = vpop.f32.mrf.mxu0
    %573 = vdwg.mxu0
    %574 = vmatprep.subr.bf16.mxu0 0
    %575 = vmatpush1.bf16.msra.mxu0 %v454
    %576 = vmatprep.subr.bf16.mxu0 0
    %577 = vmatpush1.bf16.msra.mxu0 %v453
    %578 = vmatprep.subr.bf16.mxu0 0
    %579 = vmatpush1.bf16.msra.mxu0 %v452
    %580 = vmatprep.subr.bf16.mxu0 0
    %581 = vmatpush1.bf16.msra.mxu0 %v451
    %582 = vmatprep.subr.bf16.mxu0 0
    %583 = vmatpush1.bf16.msra.mxu0 %v450
    %584 = vmatprep.subr.bf16.mxu0 0
    %585 = vmatpush1.bf16.msra.mxu0 %v449
    %586 = vmatprep.subr.bf16.mxu0 0
    %587 = vmatpush1.bf16.msra.mxu0 %v448
    %588 = vmatprep.subr.bf16.mxu0 0
    %589 = vmatpush1.bf16.msra.mxu0 %v447
    %590 = vmatprep.subr.bf16.mxu0 0
    %591 = vmatpush2.bf16.msra.mxu0 %v462
    %592 = vmatprep.subr.bf16.mxu0 0
    %593 = vmatpush2.bf16.msra.mxu0 %v461
    %594 = vmatprep.subr.bf16.mxu0 0
    %595 = vmatpush2.bf16.msra.mxu0 %v460
    %596 = vmatprep.subr.bf16.mxu0 0
    %597 = vmatpush2.bf16.msra.mxu0 %v459
    %598 = vmatprep.subr.bf16.mxu0 0
    %599 = vmatpush2.bf16.msra.mxu0 %v458
    %600 = vmatprep.subr.bf16.mxu0 0
    %601 = vmatpush2.bf16.msra.mxu0 %v457
    %602 = vmatprep.subr.bf16.mxu0 0
    %603 = vmatpush2.bf16.msra.mxu0 %v456
    %604 = vmatprep.subr.bf16.mxu0 0
    %605 = vmatpush2.bf16.msra.mxu0 %v455
    %606 = vmatprep.mubr.bf16.mxu0 %v225
    %607 = vmatmul.mubr.bf16.gmra.mxu0 %v224
    %v608 = vpop.f32.mrf.mxu0
    %v609 = vadd.f32 %v568, %v608
    %v610 = vpop.f32.mrf.mxu0
    %v611 = vpop.f32.mrf.mxu0
    %v612 = vadd.f32 %v571, %v611
    %v613 = vpop.f32.mrf.mxu0
    %614 = vdwg.mxu0
    %615 = vmatprep.subr.bf16.mxu0 0
    %616 = vmatpush1.bf16.msra.mxu0 %v470
    %617 = vmatprep.subr.bf16.mxu0 0
    %618 = vmatpush1.bf16.msra.mxu0 %v469
    %619 = vmatprep.subr.bf16.mxu0 0
    %620 = vmatpush1.bf16.msra.mxu0 %v468
    %621 = vmatprep.subr.bf16.mxu0 0
    %622 = vmatpush1.bf16.msra.mxu0 %v467
    %623 = vmatprep.subr.bf16.mxu0 0
    %624 = vmatpush1.bf16.msra.mxu0 %v466
    %625 = vmatprep.subr.bf16.mxu0 0
    %626 = vmatpush1.bf16.msra.mxu0 %v465
    %627 = vmatprep.subr.bf16.mxu0 0
    %628 = vmatpush1.bf16.msra.mxu0 %v464
    %629 = vmatprep.subr.bf16.mxu0 0
    %630 = vmatpush1.bf16.msra.mxu0 %v463
    %631 = vmatprep.subr.bf16.mxu0 0
    %632 = vmatpush2.bf16.msra.mxu0 %v478
    %633 = vmatprep.subr.bf16.mxu0 0
    %634 = vmatpush2.bf16.msra.mxu0 %v477
    %635 = vmatprep.subr.bf16.mxu0 0
    %636 = vmatpush2.bf16.msra.mxu0 %v476
    %637 = vmatprep.subr.bf16.mxu0 0
    %638 = vmatpush2.bf16.msra.mxu0 %v475
    %639 = vmatprep.subr.bf16.mxu0 0
    %640 = vmatpush2.bf16.msra.mxu0 %v474
    %641 = vmatprep.subr.bf16.mxu0 0
    %642 = vmatpush2.bf16.msra.mxu0 %v473
    %643 = vmatprep.subr.bf16.mxu0 0
    %644 = vmatpush2.bf16.msra.mxu0 %v472
    %645 = vmatprep.subr.bf16.mxu0 0
    %646 = vmatpush2.bf16.msra.mxu0 %v471
    %647 = vmatprep.mubr.bf16.mxu0 %v227
    %648 = vmatmul.mubr.bf16.gmra.mxu0 %v226
    %v649 = vpop.f32.mrf.mxu0
    %v650 = vadd.f32 %v609, %v649
    %v651 = vpop.f32.mrf.mxu0
    %v652 = vpop.f32.mrf.mxu0
    %v653 = vadd.f32 %v612, %v652
    %v654 = vpop.f32.mrf.mxu0
    %655 = vdwg.mxu0
    %656 = vmatprep.subr.bf16.mxu0 0
    %657 = vmatpush1.bf16.msra.mxu0 0
    %658 = vmatprep.subr.bf16.mxu0 0
    %659 = vmatpush1.bf16.msra.mxu0 0
    %660 = vmatprep.subr.bf16.mxu0 0
    %661 = vmatpush1.bf16.msra.mxu0 0
    %662 = vmatprep.subr.bf16.mxu0 0
    %663 = vmatpush1.bf16.msra.mxu0 0
    %664 = vmatprep.subr.bf16.mxu0 0
    %665 = vmatpush1.bf16.msra.mxu0 0
    %666 = vmatprep.subr.bf16.mxu0 0
    %667 = vmatpush1.bf16.msra.mxu0 0
    %668 = vmatprep.subr.bf16.mxu0 0
    %669 = vmatpush1.bf16.msra.mxu0 0
    %670 = vmatprep.subr.bf16.mxu0 0
    %671 = vmatpush1.bf16.msra.mxu0 %v479
    %672 = vmatprep.subr.bf16.mxu0 0
    %673 = vmatpush2.bf16.msra.mxu0 0
    %674 = vmatprep.subr.bf16.mxu0 0
    %675 = vmatpush2.bf16.msra.mxu0 0
    %676 = vmatprep.subr.bf16.mxu0 0
    %677 = vmatpush2.bf16.msra.mxu0 0
    %678 = vmatprep.subr.bf16.mxu0 0
    %679 = vmatpush2.bf16.msra.mxu0 0
    %680 = vmatprep.subr.bf16.mxu0 0
    %681 = vmatpush2.bf16.msra.mxu0 0
    %682 = vmatprep.subr.bf16.mxu0 0
    %683 = vmatpush2.bf16.msra.mxu0 0
    %684 = vmatprep.subr.bf16.mxu0 0
    %685 = vmatpush2.bf16.msra.mxu0 0
    %686 = vmatprep.subr.bf16.mxu0 0
    %687 = vmatpush2.bf16.msra.mxu0 0
    %688 = vmatprep.mubr.bf16.mxu0 0
    %689 = vmatmul.mubr.bf16.gmra.mxu0 %v531
    %v690 = vpop.f32.mrf.mxu0
    %v691 = vadd.f32 %v650, %v690
    %v692 = vpop.f32.mrf.mxu0
    %v693 = vpop.f32.mrf.mxu0
    %v694 = vadd.f32 %v653, %v693
    %v695 = vpop.f32.mrf.mxu0
    %696 = vdwg.mxu0
    %v697 = vmax.f32 %v691, 0.0
    %v698 = vmax.f32 %v694, 0.0
    %v699 = vld [vmem:[#allocation7] sm:$0xff]
    %v700 = vld [vmem:[#allocation7 + $0x8] sm:$0xff]
    %v701 = vld [vmem:[#allocation7 + $0x10] sm:$0xff]
    %v702 = vld [vmem:[#allocation7 + $0x18] sm:$0xff]
    %v703 = vld [vmem:[#allocation7 + $0x20] sm:$0xff]
    %v704 = vld [vmem:[#allocation7 + $0x28] sm:$0xff]
    %v705 = vld [vmem:[#allocation7 + $0x30] sm:$0xff]
    %v706 = vld [vmem:[#allocation7 + $0x38] sm:$0xff]
    %v707 = vld [vmem:[#allocation7 + $0x40] sm:$0xff]
    %v708 = vld [vmem:[#allocation7 + $0x48] sm:$0xff]
    %v709 = vld [vmem:[#allocation7 + $0x50] sm:$0xff]
    %v710 = vld [vmem:[#allocation7 + $0x58] sm:$0xff]
    %v711 = vld [vmem:[#allocation7 + $0x60] sm:$0xff]
    %v712 = vld [vmem:[#allocation7 + $0x68] sm:$0xff]
    %v713 = vld [vmem:[#allocation7 + $0x70] sm:$0xff]
    %v714 = vld [vmem:[#allocation7 + $0x78] sm:$0xff]
    %v715 = vld [vmem:[%s4] sm:$0x1]
    %v717 = vlaneseq
    %v718 = vshrl.u32 %v717, 7
    %v719 = vsub.s32 0, %v718
    %v720 = vrot.slane %v715, %v719
    %722 = vmatprep.subr.mxu0 0.0
    %723 = vmatpush1.msra.mxu0 %v714
    %724 = vmatprep.subr.mxu0 0.0
    %725 = vmatpush1.msra.mxu0 %v713
    %726 = vmatprep.subr.mxu0 0.0
    %727 = vmatpush1.msra.mxu0 %v712
    %728 = vmatprep.subr.mxu0 0.0
    %729 = vmatpush1.msra.mxu0 %v711
    %730 = vmatprep.subr.mxu0 0.0
    %731 = vmatpush1.msra.mxu0 %v710
    %732 = vmatprep.subr.mxu0 0.0
    %733 = vmatpush1.msra.mxu0 %v709
    %734 = vmatprep.subr.mxu0 0.0
    %735 = vmatpush1.msra.mxu0 %v708
    %736 = vmatprep.subr.mxu0 0.0
    %737 = vmatpush1.msra.mxu0 %v707
    %738 = vmatprep.subr.mxu0 0.0
    %739 = vmatpush1.msra.mxu0 %v706
    %740 = vmatprep.subr.mxu0 0.0
    %741 = vmatpush1.msra.mxu0 %v705
    %742 = vmatprep.subr.mxu0 0.0
    %743 = vmatpush1.msra.mxu0 %v704
    %744 = vmatprep.subr.mxu0 0.0
    %745 = vmatpush1.msra.mxu0 %v703
    %746 = vmatprep.subr.mxu0 0.0
    %747 = vmatpush1.msra.mxu0 %v702
    %748 = vmatprep.subr.mxu0 0.0
    %749 = vmatpush1.msra.mxu0 %v701
    %750 = vmatprep.subr.mxu0 0.0
    %751 = vmatpush1.msra.mxu0 %v700
    %752 = vmatprep.subr.mxu0 0.0
    %753 = vmatpush1.msra.mxu0 %v699
    %754 = vmatprep.subr.mxu0 0.0
    %755 = vmatpush2.msra.mxu0 0.0
    %756 = vmatprep.subr.mxu0 0.0
    %757 = vmatpush2.msra.mxu0 0.0
    %758 = vmatprep.subr.mxu0 0.0
    %759 = vmatpush2.msra.mxu0 0.0
    %760 = vmatprep.subr.mxu0 0.0
    %761 = vmatpush2.msra.mxu0 0.0
    %762 = vmatprep.subr.mxu0 0.0
    %763 = vmatpush2.msra.mxu0 0.0
    %764 = vmatprep.subr.mxu0 0.0
    %765 = vmatpush2.msra.mxu0 0.0
    %766 = vmatprep.subr.mxu0 0.0
    %767 = vmatpush2.msra.mxu0 0.0
    %768 = vmatprep.subr.mxu0 0.0
    %769 = vmatpush2.msra.mxu0 0.0
    %770 = vmatprep.subr.mxu0 0.0
    %771 = vmatpush2.msra.mxu0 0.0
    %772 = vmatprep.subr.mxu0 0.0
    %773 = vmatpush2.msra.mxu0 0.0
    %774 = vmatprep.subr.mxu0 0.0
    %775 = vmatpush2.msra.mxu0 0.0
    %776 = vmatprep.subr.mxu0 0.0
    %777 = vmatpush2.msra.mxu0 0.0
    %778 = vmatprep.subr.mxu0 0.0
    %779 = vmatpush2.msra.mxu0 0.0
    %780 = vmatprep.subr.mxu0 0.0
    %781 = vmatpush2.msra.mxu0 0.0
    %782 = vmatprep.subr.mxu0 0.0
    %783 = vmatpush2.msra.mxu0 0.0
    %784 = vmatprep.subr.mxu0 0.0
    %785 = vmatpush2.msra.mxu0 0.0
    %786 = vmatprep.mubr.f32.mxu0 0.0
    %787 = vmatmul.mubr.f32.gmra.mxu0 %v697
    %v788 = vpop.f32.mrf.mxu0
    %v789 = vadd.f32 %v720, %v788
    %v790 = vpop.f32.mrf.mxu0
    %791 = vmatprep.mubr.f32.mxu0 0.0
    %792 = vmatmul.mubr.f32.gmra.mxu0 %v698
    %v793 = vpop.f32.mrf.mxu0
    %v794 = vadd.f32 %v720, %v793
    %v795 = vpop.f32.mrf.mxu0
    %796 = vdwg.mxu0
    %v797 = vmax.f32 %v789, 0.0
    %v798 = vmax.f32 %v794, 0.0
    %v799 = vld [vmem:[#allocation8] sm:$0xff]
    %v800 = vld [vmem:[#allocation8 + $0x8] sm:$0xff]
    %v801 = vld [vmem:[#allocation8 + $0x10] sm:$0xff]
    %v802 = vld [vmem:[#allocation8 + $0x18] sm:$0xff]
    %v803 = vld [vmem:[#allocation8 + $0x20] sm:$0xff]
    %v804 = vld [vmem:[#allocation8 + $0x28] sm:$0xff]
    %v805 = vld [vmem:[#allocation8 + $0x30] sm:$0xff]
    %v806 = vld [vmem:[#allocation8 + $0x38] sm:$0xff]
    %v807 = vld [vmem:[#allocation8 + $0x40] sm:$0xff]
    %v808 = vld [vmem:[#allocation8 + $0x48] sm:$0xff]
    %v809 = vld [vmem:[#allocation8 + $0x50] sm:$0xff]
    %v810 = vld [vmem:[#allocation8 + $0x58] sm:$0xff]
    %v811 = vld [vmem:[#allocation8 + $0x60] sm:$0xff]
    %v812 = vld [vmem:[#allocation8 + $0x68] sm:$0xff]
    %v813 = vld [vmem:[#allocation8 + $0x70] sm:$0xff]
    %v814 = vld [vmem:[#allocation8 + $0x78] sm:$0xff]
    %v815 = vld [vmem:[%s6] sm:$0x1]
    %v817 = vlaneseq
    %v818 = vshrl.u32 %v817, 7
    %v819 = vsub.s32 0, %v818
    %v820 = vrot.slane %v815, %v819
    %822 = vmatprep.subr.mxu0 0.0
    %823 = vmatpush1.msra.mxu0 %v814
    %824 = vmatprep.subr.mxu0 0.0
    %825 = vmatpush1.msra.mxu0 %v813
    %826 = vmatprep.subr.mxu0 0.0
    %827 = vmatpush1.msra.mxu0 %v812
    %828 = vmatprep.subr.mxu0 0.0
    %829 = vmatpush1.msra.mxu0 %v811
    %830 = vmatprep.subr.mxu0 0.0
    %831 = vmatpush1.msra.mxu0 %v810
    %832 = vmatprep.subr.mxu0 0.0
    %833 = vmatpush1.msra.mxu0 %v809
    %834 = vmatprep.subr.mxu0 0.0
    %835 = vmatpush1.msra.mxu0 %v808
    %836 = vmatprep.subr.mxu0 0.0
    %837 = vmatpush1.msra.mxu0 %v807
    %838 = vmatprep.subr.mxu0 0.0
    %839 = vmatpush1.msra.mxu0 %v806
    %840 = vmatprep.subr.mxu0 0.0
    %841 = vmatpush1.msra.mxu0 %v805
    %842 = vmatprep.subr.mxu0 0.0
    %843 = vmatpush1.msra.mxu0 %v804
    %844 = vmatprep.subr.mxu0 0.0
    %845 = vmatpush1.msra.mxu0 %v803
    %846 = vmatprep.subr.mxu0 0.0
    %847 = vmatpush1.msra.mxu0 %v802
    %848 = vmatprep.subr.mxu0 0.0
    %849 = vmatpush1.msra.mxu0 %v801
    %850 = vmatprep.subr.mxu0 0.0
    %851 = vmatpush1.msra.mxu0 %v800
    %852 = vmatprep.subr.mxu0 0.0
    %853 = vmatpush1.msra.mxu0 %v799
    %854 = vmatprep.subr.mxu0 0.0
    %855 = vmatpush2.msra.mxu0 0.0
    %856 = vmatprep.subr.mxu0 0.0
    %857 = vmatpush2.msra.mxu0 0.0
    %858 = vmatprep.subr.mxu0 0.0
    %859 = vmatpush2.msra.mxu0 0.0
    %860 = vmatprep.subr.mxu0 0.0
    %861 = vmatpush2.msra.mxu0 0.0
    %862 = vmatprep.subr.mxu0 0.0
    %863 = vmatpush2.msra.mxu0 0.0
    %864 = vmatprep.subr.mxu0 0.0
    %865 = vmatpush2.msra.mxu0 0.0
    %866 = vmatprep.subr.mxu0 0.0
    %867 = vmatpush2.msra.mxu0 0.0
    %868 = vmatprep.subr.mxu0 0.0
    %869 = vmatpush2.msra.mxu0 0.0
    %870 = vmatprep.subr.mxu0 0.0
    %871 = vmatpush2.msra.mxu0 0.0
    %872 = vmatprep.subr.mxu0 0.0
    %873 = vmatpush2.msra.mxu0 0.0
    %874 = vmatprep.subr.mxu0 0.0
    %875 = vmatpush2.msra.mxu0 0.0
    %876 = vmatprep.subr.mxu0 0.0
    %877 = vmatpush2.msra.mxu0 0.0
    %878 = vmatprep.subr.mxu0 0.0
    %879 = vmatpush2.msra.mxu0 0.0
    %880 = vmatprep.subr.mxu0 0.0
    %881 = vmatpush2.msra.mxu0 0.0
    %882 = vmatprep.subr.mxu0 0.0
    %883 = vmatpush2.msra.mxu0 0.0
    %884 = vmatprep.subr.mxu0 0.0
    %885 = vmatpush2.msra.mxu0 0.0
    %886 = vmatprep.mubr.f32.mxu0 0.0
    %887 = vmatmul.mubr.f32.gmra.mxu0 %v797
    %v888 = vpop.f32.mrf.mxu0
    %v889 = vadd.f32 %v820, %v888
    %v890 = vpop.f32.mrf.mxu0
    %891 = vmatprep.mubr.f32.mxu0 0.0
    %892 = vmatmul.mubr.f32.gmra.mxu0 %v798
    %v893 = vpop.f32.mrf.mxu0
    %v894 = vadd.f32 %v820, %v893
    %v895 = vpop.f32.mrf.mxu0
    %896 = vdwg.mxu0
    %v897 = vlaneseq
    %v898 = vand.u32 %v897, 127
    %vm899 = vcmp.lt.s32.totalorder %v898, 10
    %v900 = vsel %vm899, %v889, -inf
    %v901 = vsel %vm899, %v894, -inf
    %902 = vmax.xlane.f32.xlu0 %v900
    %v903 = vpop.xlane.xlu0 %902
    %904 = vmax.xlane.f32.xlu0 %v901
    %v905 = vpop.xlane.xlu0 %904
    %vm906 = vcmp.eq.f32.partialorder %v900, %v903
    %vm907 = vcmp.eq.f32.partialorder %v901, %v905
    %v908 = vsel %vm906, %v898, 128
    %v909 = vsel %vm907, %v898, 128
    %v910 = vand.u32 %v908, 65535
    %v911 = vshra.s32 %v908, 16
    %v912 = vcvt.s32.f32 %v910
    %v913 = vcvt.s32.f32 %v911
    %914 = vmin.xlane.f32.xlu0 %v913
    %v915 = vpop.xlane.xlu0 %914
    %vm916 = vcmp.eq.f32.partialorder %v913, %v915
    %v917 = vsel %vm916, %v912, inf
    %918 = vmin.xlane.f32.xlu0 %v917
    %v919 = vpop.xlane.xlu0 %918
    %v920 = vcvt.f32.s32 %v919
    %v921 = vcvt.f32.s32 %v915
    %v922 = vshll.u32 %v921, 16
    %v923 = vadd.s32 %v922, %v920
    %v924 = vand.u32 %v909, 65535
    %v925 = vshra.s32 %v909, 16
    %v926 = vcvt.s32.f32 %v924
    %v927 = vcvt.s32.f32 %v925
    %928 = vmin.xlane.f32.xlu0 %v927
    %v929 = vpop.xlane.xlu0 %928
    %vm930 = vcmp.eq.f32.partialorder %v927, %v929
    %v931 = vsel %vm930, %v926, inf
    %932 = vmin.xlane.f32.xlu0 %v931
    %v933 = vpop.xlane.xlu0 %932
    %v934 = vcvt.f32.s32 %v933
    %v935 = vcvt.f32.s32 %v929
    %v936 = vshll.u32 %v935, 16
    %v937 = vadd.s32 %v936, %v934
    %vm938 = vcmp.eq.s32.totalorder %v898, 0
    %v939 = vcvt.s32.f32 %v923
    %v940 = vcvt.s32.f32 %v937
    %v941 = vsel %vm938, %v939, 0.0
    %v942 = vsel %vm938, %v940, 0.0
    %943 = vst [vmem:[#allocation10] sm:$0xff] %v797
    %944 = vst [vmem:[#allocation10 + $0x18] sm:$0xff] %v798
    %945 = vst [vmem:[#allocation10 + $0x8] sm:$0xff] %v889
    %946 = vst [vmem:[#allocation10 + $0x20] sm:$0xff] %v894
    %947 = vst [vmem:[#allocation10 + $0x10] sm:$0xff] %v941
    %948 = vst [vmem:[#allocation10 + $0x28] sm:$0xff] %v942
    %v949 = vlaneseq
    %v950 = vshrl.u32 %v949, 7
    %v951 = vadd.s32 %v950, 8
    %s952 = smul.u32 0, 16
    %v953 = vstv %s952
    %v954 = vadd.s32 %v950, %v953
    %v955 = vadd.s32 %v951, %v953
    %vm956 = vcmp.lt.s32.totalorder %v954, 2
    %vm957 = vcmp.lt.s32.totalorder %v955, 2
    %v958 = vsel %vm956, %v889, -inf
    %v959 = vsel %vm957, %v894, -inf
    %v960 = vmax.f32 %v958, %v959
    %v961 = vrot.slane %v960, 4
    %v962 = vmax.f32 %v960, %v961
    %v963 = vrot.slane %v962, 2
    %v964 = vmax.f32 %v962, %v963
    %v965 = vrot.slane %v964, 1
    %v966 = vmax.f32 %v964, %v965
    %v967 = vsub.f32 %v889, %v966
    %v968 = vsub.f32 %v894, %v966
    %v969 = vmul.f32 %v967, 1.442695
    %v970 = vpow.pop %v969
    %v971 = vmul.f32 %v968, 1.442695
    %v972 = vpow.pop %v971
    %v973 = vsel %vm956, %v970, 0.0
    %v974 = vsel %vm957, %v972, 0.0
    %v975 = vadd.f32 %v973, %v974
    %v976 = vrot.slane %v975, 4
    %v977 = vadd.f32 %v975, %v976
    %v978 = vrot.slane %v977, 2
    %v979 = vadd.f32 %v977, %v978
    %v980 = vrot.slane %v979, 1
    %v981 = vadd.f32 %v979, %v980
    %982 = vst [vmem:[#allocation11] sm:$0xff] %v966
    %983 = vst [vmem:[#allocation13] sm:$0xff] %v981
    // Predicated region
    $region46: #{tpu_custom_call.1} parent=1 // pred_check
      _
    $region47: #{tpu_custom_call.1} parent=1 // pred_check_branch
      %985 = sbr.rel (0) target = $region49
    $region48: #{tpu_custom_call.1} parent=1 // pred_region
      %s987 = ssub.s32 768, 768
      %988 = vsyncadd [#allocation4], %s987
      %s989 = sshll.u32 [#allocation10], 4
      %s990 = int_to_ptr.vmem [resolvable:$true] %s989
      %995 = dma.vmem_to_hbm [thread:$0]  %s990, 768, %s7, [#allocation4], 384, 384, 24
    $region49: #{tpu_custom_call.1} parent=1 // pred_fallthru
      _
    // Predicated region
    $region50: #{tpu_custom_call.1} parent=1 // pred_check
      _
    $region51: #{tpu_custom_call.1} parent=1 // pred_check_branch
      %997 = sbr.rel (0) target = $region53
    $region52: #{tpu_custom_call.1} parent=1 // pred_region
      %s999 = ssub.s32 128, 128
      %1000 = vsyncadd [#allocation12], %s999
      %s1002 = sshll.u32 [#allocation11], 4
      %s1003 = int_to_ptr.vmem [resolvable:$true] %s1002
      %1005 = dma.vmem_to_hbm [thread:$0]  %s1003, 128, %s8, [#allocation12]
    $region53: #{tpu_custom_call.1} parent=1 // pred_fallthru
      _
    // Predicated region
    $region54: #{tpu_custom_call.1} parent=1 // pred_check
      _
    $region55: #{tpu_custom_call.1} parent=1 // pred_check_branch
      %1007 = sbr.rel (0) target = $region57
    $region56: #{tpu_custom_call.1} parent=1 // pred_region
      %s1009 = ssub.s32 128, 128
      %1010 = vsyncadd [#allocation12], %s1009
      %s1012 = sshll.u32 [#allocation13], 4
      %s1013 = int_to_ptr.vmem [resolvable:$true] %s1012
      %1015 = dma.vmem_to_hbm [thread:$0]  %s1013, 128, %s9, [#allocation12]
    $region57: #{tpu_custom_call.1} parent=1 // pred_fallthru
      _
    // Predicated region
    $region58: #{tpu_custom_call.1} parent=1 // pred_check
      _
    $region59: #{tpu_custom_call.1} parent=1 // pred_check_branch
      %1017 = sbr.rel (0) target = $region61
    $region60: #{tpu_custom_call.1} parent=1 // pred_region
      %1018 = dma.done [#allocation4], 768
    $region61: #{tpu_custom_call.1} parent=1 // pred_fallthru
      _
    // Predicated region
    $region62: #{tpu_custom_call.1} parent=1 // pred_check
      _
    $region63: #{tpu_custom_call.1} parent=1 // pred_check_branch
      %1020 = sbr.rel (0) target = $region65
    $region64: #{tpu_custom_call.1} parent=1 // pred_region
      %1021 = dma.done [#allocation12], 128
    $region65: #{tpu_custom_call.1} parent=1 // pred_fallthru
      _
    // Predicated region
    $region66: #{tpu_custom_call.1} parent=1 // pred_check
      _
    $region67: #{tpu_custom_call.1} parent=1 // pred_check_branch
      %1023 = sbr.rel (0) target = $region69
    $region68: #{tpu_custom_call.1} parent=1 // pred_region
      %1024 = dma.done [#allocation12], 128
    $region69: #{tpu_custom_call.1} parent=1 // pred_fallthru
      _
    %1025 = vsyncpa [#allocation3], 1
    %1026 = vsyncpa [#allocation6], 1
    %1027 = vsyncpa [#allocation9], 1
    %1028 = vsyncpa [#allocation4], 1
    %1029 = vsyncpa [#allocation12], 1

</llo_original>
